<compile_context>
chip_gen: v7x
topology: tpu7x:2x2x1
jax: 0.10.0
libtpu: 0.0.40
codegen_flags: <defaults>
</compile_context>

<pallas_src>
import functools

import jax
import jax.numpy as jnp
from jax.experimental import pallas as pl
from jax.experimental.pallas import tpu as pltpu


_LANE_MULTIPLE = 256          # MXU column fill on v6e/v7x (use 128 on v5e)
_VMEM_TILE_BUDGET = 32 << 20  # conservative per-generation working budget for tiles
_VMEM_LIMIT_CAP = 48 << 20    # leave scratch headroom below v7x's 64 MiB VMEM
_PALLAS_MIN_FLOPS = 1 << 21   # below this, XLA's fused dot beats kernel launch cost


# ---------------------------------------------------------------------------
# Kernel body: one (tm, tn) output tile = x_tile @ w_tile + bias_tile.
# ---------------------------------------------------------------------------
def _linear_kernel(x_ref, w_ref, b_ref, o_ref):
    acc = jnp.dot(x_ref[...], w_ref[...], preferred_element_type=jnp.float32)
    o_ref[...] = (acc + b_ref[...].astype(jnp.float32)).astype(o_ref.dtype)


# ---------------------------------------------------------------------------
# One-time parameter preparation (init-time glue, NOT per forward call).
# ---------------------------------------------------------------------------
def prepare_classifier_params(weight, bias, param_dtype=jnp.bfloat16,
                              lane_multiple=_LANE_MULTIPLE):
    """weight: [num_classes, d_model] (PyTorch convention), bias: [num_classes].

    Returns (w_t_padded [d_model, n_pad] in param_dtype,
             bias_padded [1, n_pad] in float32,
             num_classes)."""
    num_classes, d_model = weight.shape
    n_pad = max(lane_multiple,
                ((num_classes + lane_multiple - 1) // lane_multiple) * lane_multiple)
    w_t = (jnp.zeros((d_model, n_pad), param_dtype)
           .at[:, :num_classes].set(weight.T.astype(param_dtype)))
    b_p = (jnp.zeros((1, n_pad), jnp.float32)
           .at[0, :num_classes].set(bias.astype(jnp.float32)))
    return w_t, b_p, num_classes


# ---------------------------------------------------------------------------
# Tile selection driven by the actual per-tile VMEM footprint.
# ---------------------------------------------------------------------------
def _row_multiple(itemsize):
    # dtype-aware sublane packing: f32 -> 8 rows, bf16 -> 16, int8/fp8 -> 32
    return {4: 8, 2: 16, 1: 32}.get(itemsize, 8)


def _select_tiles(B, d_model, n_pad, x_isz, w_isz, b_isz, o_isz,
                  budget=_VMEM_TILE_BUDGET):
    # --- N tile: keep the DOUBLE-buffered weight block within half the budget.
    tn_fit = (budget // 2) // max(1, 2 * d_model * w_isz)
    if tn_fit >= n_pad:
        tn = n_pad
    else:
        tn = min(n_pad, max(128, (tn_fit // 128) * 128))

    # --- batch tile: largest that fits the remaining budget (double-buffered x + out).
    row_mult = _row_multiple(min(x_isz, o_isz))
    fixed = 2 * (d_model * tn * w_isz + tn * b_isz)          # weight + bias buffers
    per_row = 2 * (d_model * x_isz + tn * o_isz)             # x + out buffers per row
    rem = max(budget - fixed, budget // 8)
    tm_fit = max(row_mult, rem // per_row)

    if B <= row_mult:
        tm = B                                   # block equals full dim -> always legal
    else:
        tm = min(tm_fit, B)
        if B >= 2 * row_mult:
            # Keep >=2 batch steps so the second TensorCore on v7x has work.
            half = (B + 1) // 2
            tm = min(tm, ((half + row_mult - 1) // row_mult) * row_mult)
        tm = max(row_mult, (tm // row_mult) * row_mult)
    return tm, tn


# ---------------------------------------------------------------------------
# Forward: x [B, d_model] -> logits [B, num_classes]
# ---------------------------------------------------------------------------
@functools.partial(jax.jit, static_argnums=(3, 4, 5))
def classifier_forward(emb_features, w_t_padded, bias_padded, num_classes,
                       use_pallas=None, return_padded=False):
    x = emb_features["sentence_embedding"]
    B, d_model = x.shape
    n_pad = w_t_padded.shape[1]
    compute_dtype = w_t_padded.dtype
    out_dtype = x.dtype

    if use_pallas is None:
        use_pallas = (2 * B * d_model * n_pad) >= _PALLAS_MIN_FLOPS

    x_c = x.astype(compute_dtype)

    if not use_pallas:
        # Tiny problems: the pallas_call launch overhead dominates; let XLA fuse it.
        logits_padded = (jnp.dot(x_c, w_t_padded, preferred_element_type=jnp.float32)
                         + bias_padded).astype(out_dtype)
        return logits_padded if return_padded else logits_padded[:, :num_classes]

    x_isz = jnp.dtype(compute_dtype).itemsize
    w_isz = jnp.dtype(w_t_padded.dtype).itemsize
    b_isz = jnp.dtype(bias_padded.dtype).itemsize
    o_isz = jnp.dtype(out_dtype).itemsize

    tm, tn = _select_tiles(B, d_model, n_pad, x_isz, w_isz, b_isz, o_isz)
    grid_b = pl.cdiv(B, tm)
    grid_n = pl.cdiv(n_pad, tn)

    # VMEM footprint: 2 pipeline buffers for EVERY operand (constant-index_map weight
    # included), capped well below v7x's 64 MiB physical VMEM.
    vmem_need = 2 * (tm * d_model * x_isz + tm * tn * o_isz
                     + d_model * tn * w_isz + tn * b_isz)
    vmem_limit = int(min(max(2 * vmem_need, 16 << 20), _VMEM_LIMIT_CAP))

    weight_streams = 1 if grid_n == 1 else grid_b
    cost = pl.CostEstimate(
        flops=2 * B * d_model * n_pad,
        transcendentals=0,
        bytes_accessed=(B * d_model * x_isz
                        + d_model * n_pad * w_isz * weight_streams
                        + n_pad * b_isz * weight_streams
                        + B * n_pad * o_isz),
    )

    logits_padded = pl.pallas_call(
        _linear_kernel,
        out_shape=jax.ShapeDtypeStruct((B, n_pad), out_dtype),
        grid_spec=pltpu.PrefetchScalarGridSpec(
            num_scalar_prefetch=0,
            grid=(grid_b, grid_n),
            in_specs=[
                # x: tiled along batch, resident across the class axis.
                pl.BlockSpec((tm, d_model), lambda i, j: (i, 0)),
                # weight: streams along the class axis (full d_model rows per block).
                pl.BlockSpec((d_model, tn), lambda i, j: (0, j)),
                # bias: streams along the class axis with the weight.
                pl.BlockSpec((1, tn), lambda i, j: (0, j)),
            ],
            out_specs=pl.BlockSpec((tm, tn), lambda i, j: (i, j)),
        ),
        compiler_params=pltpu.CompilerParams(
            dimension_semantics=("parallel", "parallel"),
            vmem_limit_bytes=vmem_limit,
        ),
        cost_estimate=cost,
    )(x_c, w_t_padded, bias_padded)

    if return_padded:
        # Consumers that can mask padded classes avoid an extra full-array copy.
        return logits_padded
    return logits_padded[:, :num_classes]


if __name__ == "__main__":
    key = jax.random.PRNGKey(0)

    def run_case(batch, d_model, num_classes, k):
        kx, kw, kb = jax.random.split(k, 3)
        x = jax.random.normal(kx, (batch, d_model), dtype=jnp.float32)
        weight = jax.random.normal(kw, (num_classes, d_model), dtype=jnp.float32) * 0.1
        bias = jax.random.normal(kb, (num_classes,), dtype=jnp.float32) * 0.1

        # One-time (init-time) parameter prep: transpose + lane-pad + bf16 cast.
        w_t_padded, bias_padded, nc = prepare_classifier_params(weight, bias)
        emb_features = {"sentence_embedding": x}

        # Force the Pallas path so the kernel is exercised even at tiny shapes.
        logits = classifier_forward(emb_features, w_t_padded, bias_padded, nc,
                                    True, False)
        jax.block_until_ready(logits)

        # Reference (same math as torch nn.Linear in f32); bf16 streams => loose tol.
        ref = x @ weight.T + bias
        assert logits.shape == (batch, num_classes)
        assert jnp.allclose(logits, ref, atol=5e-2, rtol=5e-2), (
            float(jnp.max(jnp.abs(logits - ref))))
        return logits

    k1, k2 = jax.random.split(key)
    run_case(2, 32, 8, k1)      # shapes implied by the module (batch=2, d_model=32)
    run_case(64, 64, 200, k2)   # exercises lane padding + multi-step batch grid

    print("KERNEL_OK")
</pallas_src>

<mosaic_0001>
module attributes {stable_mosaic.version = 11 : i64} {
  func.func @_linear_kernel(%arg0: i32, %arg1: i32, %arg2: memref<2x32xbf16, #tpu.memory_space<vmem>>, %arg3: memref<32x256xbf16, #tpu.memory_space<vmem>>, %arg4: memref<1x256xf32, #tpu.memory_space<vmem>>, %arg5: memref<2x256xf32, #tpu.memory_space<vmem>>) attributes {dimension_semantics = [#tpu.dimension_semantics<parallel>, #tpu.dimension_semantics<parallel>], iteration_bounds = array<i64: 1, 1>, scalar_prefetch = 0 : i64, scratch_operands = 0 : i64, tpu.core_type = #tpu.core_type<tc>, window_params = [{transform_indices = @transform_0, window_bounds = array<i64: 2, 32>}, {transform_indices = @transform_1, window_bounds = array<i64: 32, 256>}, {transform_indices = @transform_2, window_bounds = array<i64: 1, 256>}, {transform_indices = @transform_3, window_bounds = array<i64: 2, 256>}]} {
    %c0 = arith.constant 0 : index
    %c0_0 = arith.constant 0 : index
    %0 = vector.load %arg2[%c0, %c0_0] : memref<2x32xbf16, #tpu.memory_space<vmem>>, vector<2x32xbf16>
    %c0_1 = arith.constant 0 : index
    %c0_2 = arith.constant 0 : index
    %1 = vector.load %arg3[%c0_1, %c0_2] : memref<32x256xbf16, #tpu.memory_space<vmem>>, vector<32x256xbf16>
    %cst = arith.constant dense<0.000000e+00> : vector<2x256xf32>
    %2 = tpu.matmul %0, %1, %cst {dimension_numbers = #tpu.dot_dimension_numbers<[1], [0], [0], [1], [0, 0, 1, 1], [], []>} : vector<2x32xbf16>, vector<32x256xbf16>, vector<2x256xf32> -> vector<2x256xf32>
    %c0_3 = arith.constant 0 : index
    %c0_4 = arith.constant 0 : index
    %3 = vector.load %arg4[%c0_3, %c0_4] : memref<1x256xf32, #tpu.memory_space<vmem>>, vector<1x256xf32>
    %4 = vector.broadcast %3 : vector<1x256xf32> to vector<2x256xf32>
    %5 = arith.addf %2, %4 : vector<2x256xf32>
    %c0_5 = arith.constant 0 : index
    %c0_6 = arith.constant 0 : index
    %6 = vector.load %arg5[%c0_5, %c0_6] : memref<2x256xf32, #tpu.memory_space<vmem>>, vector<2x256xf32>
    tpu.vector_store %arg5[%c0_5, %c0_6], %5 {strides = array<i32>} : memref<2x256xf32, #tpu.memory_space<vmem>>, vector<2x256xf32>,
    return
  }
  func.func @transform_0(%arg0: i32, %arg1: i32) -> (i32, i32) {
    %c0_i32 = arith.constant 0 : i32
    %c0_i32_0 = arith.constant 0 : i32
    return %arg0, %c0_i32 : i32, i32
  }
  func.func @transform_1(%arg0: i32, %arg1: i32) -> (i32, i32) {
    %c0_i32 = arith.constant 0 : i32
    %c0_i32_0 = arith.constant 0 : i32
    return %c0_i32, %arg1 : i32, i32
  }
  func.func @transform_2(%arg0: i32, %arg1: i32) -> (i32, i32) {
    %c0_i32 = arith.constant 0 : i32
    %c0_i32_0 = arith.constant 0 : i32
    return %c0_i32, %arg1 : i32, i32
  }
  func.func @transform_3(%arg0: i32, %arg1: i32) -> (i32, i32) {
    %c0_i32 = arith.constant 0 : i32
    return %arg0, %arg1 : i32, i32
  }
}

</mosaic_0001>

<llo_original>
// kernel: classifier_forward.1
$region0: #{classifier_forward.1}
  #allocation0 [shape = 'u32[]', space=smem, size = 0x4, offset = 0x4, fixed_abs, tag = 'smem constant byte address 0x4 - core index']
  #allocation1 [shape = 'u32[144,128]{1,0:T(1,128)}', space=vmem, size = 0x12000, scoped, tag = 'internal scratch']
  %s0 = inlined_call_operand.vmem [shape: bf16[2,32], index: 0, kind: input, shape index: {}]
  %s1 = inlined_call_operand.hbm [shape: bf16[32,256], index: 1, kind: input, shape index: {}]
  %s2 = inlined_call_operand.vmem [shape: f32[1,256], index: 2, kind: input, shape index: {}]
  %s3 = inlined_call_operand.vmem [shape: f32[2,256], index: 3, kind: output, shape index: {}]
  %s4 = sld [smem:[#allocation0]]
  $region26: #{classifier_forward.1} parent=0
    _
  %s6 = ssub.s32 1, %s4
  %s7 = scalar_select 0, %s6, %s4
  $region1: #{classifier_forward.1} parent=0
    #allocation2 [shape = 'u8[16384]{0}', space=vmem, size = 0x4000, scoped, tag = 'input window, operand 1, single buffered']
    #allocation3 [shape = 's32[1]{0}', space=sflag, size = 0x4, scoped, tag = 'scoped memory for classifier_forward.1']
    %8 = vsyncpa [#allocation3], 0
    // Predicated region
    $region2: #{classifier_forward.1} parent=1 // pred_check
      _
    $region3: #{classifier_forward.1} parent=1 // pred_check_branch
      %10 = sbr.rel (0) target = $region5
    $region4: #{classifier_forward.1} parent=1 // pred_region
      _
    $region5: #{classifier_forward.1} parent=1 // pred_fallthru
      _
    // Predicated region
    $region6: #{classifier_forward.1} parent=1 // pred_check
      _
    $region7: #{classifier_forward.1} parent=1 // pred_check_branch
      %12 = sbr.rel (0) target = $region9
    $region8: #{classifier_forward.1} parent=1 // pred_region
      %s14 = ssub.s32 512, 512
      %15 = vsyncadd [#allocation3], %s14
      %s16 = sshll.u32 [#allocation2], 4
      %s17 = int_to_ptr.vmem [resolvable:$true] %s16
      %22 = dma.hbm_to_vmem [thread:$0]  %s1, 512, %s17, [#allocation3], 128, 128, 8
    $region9: #{classifier_forward.1} parent=1 // pred_fallthru
      _
    // Predicated region
    $region10: #{classifier_forward.1} parent=1 // pred_check
      _
    $region11: #{classifier_forward.1} parent=1 // pred_check_branch
      %24 = sbr.rel (0) target = $region13
    $region12: #{classifier_forward.1} parent=1 // pred_region
      _
    $region13: #{classifier_forward.1} parent=1 // pred_fallthru
      _
    // Predicated region
    $region14: #{classifier_forward.1} parent=1 // pred_check
      _
    $region15: #{classifier_forward.1} parent=1 // pred_check_branch
      %26 = sbr.rel (0) target = $region17
    $region16: #{classifier_forward.1} parent=1 // pred_region
      %27 = dma.done [#allocation3], 512
    $region17: #{classifier_forward.1} parent=1 // pred_fallthru
      _
    %v29 = vld [vmem:[%s0] sm:$0x1]
    %v30 = vld [vmem:[#allocation2] sm:$0xff]
    %v31 = vld [vmem:[#allocation2 + $0x8] sm:$0xff]
    %v32 = vld [vmem:[#allocation2 + $0x10] sm:$0xff]
    %v33 = vld [vmem:[#allocation2 + $0x18] sm:$0xff]
    %v34 = vld [vmem:[%s2] sm:$0x3]
    %v36 = vlaneseq
    %v37 = vshrl.u32 %v36, 7
    %v38 = vsub.s32 0, %v37
    %v39 = vrot.slane %v34, %v38
    %v40 = vlaneseq
    %v41 = vshrl.u32 %v40, 7
    %v42 = vsub.s32 1, %v41
    %v43 = vrot.slane %v34, %v42
    %v50 = vunpack.c.l.b16 %v30
    %v51 = vunpack.c.h.b16 %v30
    %v52 = vunpack.c.l.b16 %v31
    %v53 = vunpack.c.h.b16 %v31
    %v54 = vunpack.c.l.b16 %v32
    %v55 = vunpack.c.h.b16 %v32
    %v56 = vunpack.c.l.b16 %v33
    %v57 = vunpack.c.h.b16 %v33
    %v58 = vpack.c.b16 %v52, %v50
    %v59 = vpack.c.b16 %v53, %v51
    %v60 = vpack.c.b16 %v56, %v54
    %v61 = vpack.c.b16 %v57, %v55
    %vm66 = vcmask 261120
    %v68 = vsel %vm66, %v29, 0
    %70 = vmatprep.subr.bf16.mxu0 %v59
    %71 = vmatpush1.bf16.msra.mxu0 %v58
    %72 = vmatprep.subr.bf16.mxu0 %v61
    %73 = vmatpush1.bf16.msra.mxu0 %v60
    %74 = vmatprep.subr.bf16.mxu0 0
    %75 = vmatpush1.bf16.msra.mxu0 0
    %76 = vmatprep.subr.bf16.mxu0 0
    %77 = vmatpush1.bf16.msra.mxu0 0
    %78 = vmatprep.subr.bf16.mxu0 0
    %79 = vmatpush1.bf16.msra.mxu0 0
    %80 = vmatprep.subr.bf16.mxu0 0
    %81 = vmatpush1.bf16.msra.mxu0 0
    %82 = vmatprep.subr.bf16.mxu0 0
    %83 = vmatpush1.bf16.msra.mxu0 0
    %84 = vmatprep.subr.bf16.mxu0 0
    %85 = vmatpush1.bf16.msra.mxu0 0
    %86 = vmatprep.subr.bf16.mxu0 0
    %87 = vmatpush1.bf16.msra.mxu0 0
    %88 = vmatprep.subr.bf16.mxu0 0
    %89 = vmatpush1.bf16.msra.mxu0 0
    %90 = vmatprep.subr.bf16.mxu0 0
    %91 = vmatpush1.bf16.msra.mxu0 0
    %92 = vmatprep.subr.bf16.mxu0 0
    %93 = vmatpush1.bf16.msra.mxu0 0
    %94 = vmatprep.subr.bf16.mxu0 0
    %95 = vmatpush1.bf16.msra.mxu0 0
    %96 = vmatprep.subr.bf16.mxu0 0
    %97 = vmatpush1.bf16.msra.mxu0 0
    %98 = vmatprep.subr.bf16.mxu0 0
    %99 = vmatpush1.bf16.msra.mxu0 0
    %100 = vmatprep.subr.bf16.mxu0 0
    %101 = vmatpush1.bf16.msra.mxu0 0
    %102 = vmatprep.mubr.bf16.mxu0 0
    %103 = vmatmul.mubr.bf16.gmra.mrb[0].mxu0 %v68
    %v104 = vpop.f32.mrb[0].mxu0
    %v105 = vadd.f32 %v39, %v104
    %v106 = vpop.f32.mrb[0].mxu0
    %v107 = vadd.f32 %v43, %v106
    %v108 = vpop.f32.mrb[0].mxu0
    %v109 = vpop.f32.mrb[0].mxu0
    %110 = vdwg.mxu0
    %v113 = vcombine.low %v105, %v107
    %v115 = vunpack.c.l.s4 1983009808
    %v116 = vunpack.c.0.s8 %v115
    %v117 = vlaneseq
    %v118 = vshrl.u32 %v117, 7
    %v119 = vsub.s32 %v116, %v118
    %v120 = vrot.slane %v113, %v119
    %122 = vst [vmem:[%s3] sm:$0xf] %v120
    // Predicated region
    $region18: #{classifier_forward.1} parent=1 // pred_check
      _
    $region19: #{classifier_forward.1} parent=1 // pred_check_branch
      %124 = sbr.rel (0) target = $region21
    $region20: #{classifier_forward.1} parent=1 // pred_region
      _
    $region21: #{classifier_forward.1} parent=1 // pred_fallthru
      _
    // Predicated region
    $region22: #{classifier_forward.1} parent=1 // pred_check
      _
    $region23: #{classifier_forward.1} parent=1 // pred_check_branch
      %126 = sbr.rel (0) target = $region25
    $region24: #{classifier_forward.1} parent=1 // pred_region
      _
    $region25: #{classifier_forward.1} parent=1 // pred_fallthru
      _
    %127 = vsyncpa [#allocation3], 1

</llo_original>
